<compile_context>
chip_gen: v6e
topology: v6e:2x2x1
jax: 0.10.0
libtpu: 0.0.40
codegen_flags: <defaults>
</compile_context>

<pallas_src>
import functools
import math
from typing import NamedTuple

import jax
import jax.numpy as jnp
from jax.experimental import pallas as pl
from jax.experimental.pallas import tpu as pltpu

_LANE = 128
_SUBLANE = 8


def _round_up(x, m):
    return ((x + m - 1) // m) * m


# ---------------------------------------------------------------------------
# Kernels
# ---------------------------------------------------------------------------

def _fcc_fused_kernel(x_ref, w1t_ref, w2t_ref, o_ref, *, out_scale, compute_dtype):
    """One batch tile; w1t/w2t fully resident (constant index maps).

    x_ref  : (tm, in_p)    input tile (original dtype, cast to bf16 here)
    w1t_ref: (in_p, h_p)   fc1 weight, pre-transposed, compute_dtype
    w2t_ref: (h_p, out_p)  fc2 weight, pre-transposed, compute_dtype
    o_ref  : (tm, out_p)
    """
    h = jnp.dot(x_ref[...].astype(compute_dtype), w1t_ref[...],
                preferred_element_type=jnp.float32)
    h = h * h  # square activation (scales folded into out_scale)
    o = jnp.dot(h.astype(compute_dtype), w2t_ref[...],
                preferred_element_type=jnp.float32)
    o_ref[...] = (o * out_scale).astype(o_ref.dtype)


def _fcc_ktiled_kernel(x_ref, w1t_ref, w2t_ref, o_ref, acc_ref, *,
                       out_scale, compute_dtype):
    """Grid step (batch tile i, K tile k); f32 accumulator resident across K.

    x_ref  : (tm, tk)      input tile
    w1t_ref: (tk, h_p)     K-slice of pre-transposed fc1 weight (compute_dtype)
    w2t_ref: (h_p, out_p)  pre-transposed fc2 weight (resident)
    o_ref  : (tm, out_p)   written at last K step
    acc_ref: (tm, h_p) f32 hidden-state accumulator
    """
    k = pl.program_id(1)

    @pl.when(k == 0)
    def _():
        acc_ref[...] = jnp.zeros_like(acc_ref)

    acc_ref[...] += jnp.dot(x_ref[...].astype(compute_dtype), w1t_ref[...],
                            preferred_element_type=jnp.float32)

    @pl.when(k == pl.num_programs(1) - 1)
    def _():
        h = acc_ref[...]
        h = h * h
        o = jnp.dot(h.astype(compute_dtype), w2t_ref[...],
                    preferred_element_type=jnp.float32)
        o_ref[...] = (o * out_scale).astype(o_ref.dtype)


# ---------------------------------------------------------------------------
# Weight preparation (once, at model setup)
# ---------------------------------------------------------------------------

class FccWeights(NamedTuple):
    w1t: jax.Array      # (in_p, h_p)  compute dtype, zero-padded
    w2t: jax.Array      # (h_p, out_p) compute dtype, zero-padded
    in_size: int
    h_size: int
    out_size: int


def prepare_fcc_weights(w1, w2, compute_dtype=jnp.bfloat16):
    """Transpose + cast + pad the PyTorch-layout weights once.

    w1: (h_size, in_size) fc1.weight; w2: (out_size, h_size) fc2.weight.
    Padding h/out/in to multiples of 128 keeps all kernel blocks (8,128)-legal
    and makes output stores lane-dense; zero padding is exact (padded hidden
    units are 0, padded output columns are sliced away).
    """
    h_size, in_size = w1.shape
    out_size, h2 = w2.shape
    assert h2 == h_size, (w1.shape, w2.shape)

    in_p = _round_up(in_size, _LANE)
    h_p = _round_up(h_size, _LANE)
    out_p = _round_up(out_size, _LANE)

    w1t = jnp.zeros((in_p, h_p), compute_dtype)
    w1t = w1t.at[:in_size, :h_size].set(w1.T.astype(compute_dtype))
    w2t = jnp.zeros((h_p, out_p), compute_dtype)
    w2t = w2t.at[:h_size, :out_size].set(w2.T.astype(compute_dtype))
    return FccWeights(w1t, w2t, in_size, h_size, out_size)


# ---------------------------------------------------------------------------
# Hardware / tile selection
# ---------------------------------------------------------------------------

def _tpu_topology():
    """(vmem_capacity_bytes, two_tensorcores).  Conservative fallbacks."""
    vmem_cap = 64 << 20  # v7x-like default: never over-commit
    try:
        info = pltpu.get_tpu_info()
        cap = getattr(info, "vmem_capacity_bytes", None)
        if cap:
            vmem_cap = int(cap)
    except Exception:
        pass
    two_tc = False
    try:
        two_tc = "v7" in jax.devices()[0].device_kind.lower()
    except Exception:
        pass
    return vmem_cap, two_tc


def _fused_vmem_bytes(tm, in_p, h_p, out_p, cb):
    acc = 4
    return (2 * tm * in_p * cb        # x tile, double buffered
            + 2 * in_p * h_p * cb     # w1t (constant-index BlockSpec still 2 bufs)
            + 2 * h_p * out_p * cb    # w2t
            + 2 * tm * out_p * acc    # output tile
            + tm * h_p * (acc + cb)   # h intermediate (f32 + bf16 copy)
            + tm * out_p * acc)


def _ktiled_vmem_bytes(tm, tk, h_p, out_p, cb):
    acc = 4
    return (2 * tm * tk * cb          # x tile
            + 2 * tk * h_p * cb       # w1t K-slice
            + 2 * h_p * out_p * cb    # w2t (resident)
            + 2 * tm * out_p * acc    # output tile
            + tm * h_p * acc          # accumulator scratch
            + tm * h_p * cb + tm * out_p * acc)


def _tm_candidates(n_rows, two_tc):
    n8 = _round_up(max(n_rows, _SUBLANE), _SUBLANE)
    cap = 256 if two_tc else 512          # v7x: smaller cap (64 MiB VMEM)
    tm_cap = min(cap, n8)
    # v7x has 2 TensorCores: make sure the "parallel" batch axis has >=2 steps.
    if two_tc and n8 >= 16:
        tm_cap = min(tm_cap, max(_SUBLANE, (n8 // 2) // _SUBLANE * _SUBLANE))
    cand = [c for c in (512, 256, 128, 64, 32, 16, 8) if c <= tm_cap]
    if tm_cap not in cand:
        cand = [tm_cap] + cand
    return cand


def _select_fused_tm(n_rows, in_p, h_p, out_p, cb, budget, two_tc):
    for tm in _tm_candidates(n_rows, two_tc):
        if _fused_vmem_bytes(tm, in_p, h_p, out_p, cb) <= budget:
            return tm
    return None


def _select_ktiled_tiles(n_rows, in_p, h_p, out_p, cb, budget, two_tc, tk_cap=None):
    tk_max = 1024 if two_tc else 2048
    if tk_cap is not None:
        tk_max = min(tk_max, tk_cap)
    tk_max = max(tk_max, _LANE)
    start = min(tk_max, in_p)
    tk_cand = [d for d in range(start, _LANE - 1, -_LANE) if in_p % d == 0]
    if not tk_cand:
        tk_cand = [in_p]
    tm_cand = _tm_candidates(n_rows, two_tc)
    for tm in tm_cand:
        for tk in tk_cand:
            if _ktiled_vmem_bytes(tm, tk, h_p, out_p, cb) <= budget:
                return tm, tk
    # Best effort; TODO(synk): tile h_size/out_size when even this overflows.
    return tm_cand[-1], tk_cand[-1]


# ---------------------------------------------------------------------------
# Forward
# ---------------------------------------------------------------------------

def fcc_forward(x, weights: FccWeights, *, max_resident_w1_bytes=16 << 20,
                max_k_tile=None):
    """x: (N, C, H, W) or (N, in_size); weights: from prepare_fcc_weights."""
    N = x.shape[0]
    x_flat = x.reshape(N, -1)
    if x_flat.shape[1] != weights.in_size:
        raise ValueError(f"expected in_size={weights.in_size}, got {x_flat.shape[1]}")

    in_p, h_p = weights.w1t.shape
    out_p = weights.w2t.shape[1]
    compute_dtype = weights.w1t.dtype
    cb = jnp.dtype(compute_dtype).itemsize
    out_dtype = x_flat.dtype

    # Folded scale: (s1*(x@W1.T))^2 @ W2.T * s2 == (x@W1.T)^2 @ W2.T * s1^2*s2
    out_scale = (1.0 / weights.in_size) * math.sqrt(1.0 / weights.h_size)

    vmem_cap, two_tc = _tpu_topology()
    budget = int(vmem_cap * 3 // 4)          # ~96 MiB on 128 MiB parts
    if two_tc:
        budget = min(budget, 48 << 20)       # v7x: 64 MiB per TensorCore
    budget = max(budget, 16 << 20)

    w1_bytes = in_p * h_p * cb
    use_fused = (2 * w1_bytes) <= min(max_resident_w1_bytes, budget // 3)

    if use_fused:
        tm = _select_fused_tm(N, in_p, h_p, out_p, cb, budget, two_tc)
        if tm is None:
            use_fused = False

    if use_fused:
        n_pad = _round_up(max(N, _SUBLANE), tm)
        xp = x_flat
        if n_pad != N or in_p != weights.in_size:
            xp = jnp.pad(x_flat, ((0, n_pad - N), (0, in_p - weights.in_size)))
        est = _fused_vmem_bytes(tm, in_p, h_p, out_p, cb)
        vmem_limit = int(min(max(budget, est * 5 // 4), vmem_cap * 9 // 10))

        kernel = functools.partial(_fcc_fused_kernel, out_scale=out_scale,
                                   compute_dtype=compute_dtype)
        out_padded = pl.pallas_call(
            kernel,
            out_shape=jax.ShapeDtypeStruct((n_pad, out_p), out_dtype),
            grid_spec=pltpu.PrefetchScalarGridSpec(
                num_scalar_prefetch=0,
                grid=(n_pad // tm,),
                in_specs=[
                    pl.BlockSpec((tm, in_p), lambda i: (i, 0)),     # x
                    pl.BlockSpec((in_p, h_p), lambda i: (0, 0)),    # w1t resident
                    pl.BlockSpec((h_p, out_p), lambda i: (0, 0)),   # w2t resident
                ],
                out_specs=pl.BlockSpec((tm, out_p), lambda i: (i, 0)),
            ),
            compiler_params=pltpu.CompilerParams(
                dimension_semantics=("parallel",),
                vmem_limit_bytes=vmem_limit,
            ),
        )(xp, weights.w1t, weights.w2t)
    else:
        tm, tk = _select_ktiled_tiles(N, in_p, h_p, out_p, cb, budget, two_tc,
                                      tk_cap=max_k_tile)
        n_pad = _round_up(max(N, _SUBLANE), tm)
        xp = x_flat
        if n_pad != N or in_p != weights.in_size:
            xp = jnp.pad(x_flat, ((0, n_pad - N), (0, in_p - weights.in_size)))
        est = _ktiled_vmem_bytes(tm, tk, h_p, out_p, cb)
        vmem_limit = int(min(max(budget, est * 5 // 4), vmem_cap * 9 // 10))

        kernel = functools.partial(_fcc_ktiled_kernel, out_scale=out_scale,
                                   compute_dtype=compute_dtype)
        out_padded = pl.pallas_call(
            kernel,
            out_shape=jax.ShapeDtypeStruct((n_pad, out_p), out_dtype),
            grid_spec=pltpu.PrefetchScalarGridSpec(
                num_scalar_prefetch=0,
                grid=(n_pad // tm, in_p // tk),
                in_specs=[
                    pl.BlockSpec((tm, tk), lambda i, k: (i, k)),        # x
                    pl.BlockSpec((tk, h_p), lambda i, k: (k, 0)),       # w1t K-slice
                    pl.BlockSpec((h_p, out_p), lambda i, k: (0, 0)),    # w2t resident
                ],
                out_specs=pl.BlockSpec((tm, out_p), lambda i, k: (i, 0)),
                scratch_shapes=[pltpu.VMEM((tm, h_p), jnp.float32)],
            ),
            compiler_params=pltpu.CompilerParams(
                dimension_semantics=("parallel", "arbitrary"),
                vmem_limit_bytes=vmem_limit,
            ),
        )(xp, weights.w1t, weights.w2t)

    return out_padded[:N, :weights.out_size]


# ---------------------------------------------------------------------------
# References
# ---------------------------------------------------------------------------

def fcc_reference(x, w1, w2):
    """Exact f32 reference matching the PyTorch module."""
    N = x.shape[0]
    xf = x.reshape(N, -1).astype(jnp.float32)
    in_size = xf.shape[1]
    h_size = w1.shape[0]
    h = math.sqrt(1.0 / in_size) * (xf @ w1.T.astype(jnp.float32))
    h = h * h
    return math.sqrt(1.0 / h_size) * (h @ w2.T.astype(jnp.float32))


def fcc_reference_mixed(x, w1, w2, compute_dtype=jnp.bfloat16):
    """Same math as the kernel: bf16 MXU operands, f32 accumulation, folded scale."""
    N = x.shape[0]
    xf = x.reshape(N, -1)
    in_size = xf.shape[1]
    h_size = w1.shape[0]
    h = jnp.dot(xf.astype(compute_dtype), w1.T.astype(compute_dtype),
                preferred_element_type=jnp.float32)
    h = h * h
    o = jnp.dot(h.astype(compute_dtype), w2.T.astype(compute_dtype),
                preferred_element_type=jnp.float32)
    return ((1.0 / in_size) * math.sqrt(1.0 / h_size)) * o


if __name__ == "__main__":
    key = jax.random.PRNGKey(0)
    k_x, k_w1, k_w2 = jax.random.split(key, 3)

    # Small shapes: batch=2, channels=4, spatial=16 -> in_size = 4*16*16 = 1024
    N, C, H, W = 2, 4, 16, 16
    in_size = C * H * W
    h_size = 128
    out_size = 32

    x = jax.random.normal(k_x, (N, C, H, W), dtype=jnp.float32)
    # torch.nn.init.normal_(..., mean=0.0, std=1.0): standard normal weights
    w1 = jax.random.normal(k_w1, (h_size, in_size), dtype=jnp.float32)   # fc1.weight
    w2 = jax.random.normal(k_w2, (out_size, h_size), dtype=jnp.float32)  # fc2.weight

    weights = prepare_fcc_weights(w1, w2)  # once, at "model setup"

    ref_f32 = fcc_reference(x, w1, w2)
    ref_mix = fcc_reference_mixed(x, w1, w2)

    def check(out, tag):
        out = jax.block_until_ready(out)
        assert out.shape == (N, out_size), (tag, out.shape)
        # Tight check vs a reference that uses the same bf16/f32 mixed precision.
        assert jnp.allclose(out, ref_mix, rtol=1e-3, atol=1e-3), (
            tag, float(jnp.max(jnp.abs(out - ref_mix))))
        # Loose check vs the exact f32 PyTorch-equivalent reference.
        rel = jnp.linalg.norm(out - ref_f32) / jnp.linalg.norm(ref_f32)
        assert float(rel) < 2e-2, (tag, float(rel))

    # Path 1: fused (w1 resident, no K tiling) — what the small demo shape selects.
    check(fcc_forward(x, weights), "fused")
    # Path 2: force the K-tiled accumulator path so it is exercised/validated too.
    check(fcc_forward(x, weights, max_resident_w1_bytes=0, max_k_tile=256), "ktiled")

    print("KERNEL_OK")
</pallas_src>

<mosaic_0001>
module attributes {stable_mosaic.version = 11 : i64} {
  func.func @_fcc_fused_kernel(%arg0: i32, %arg1: memref<8x1024xf32, #tpu.memory_space<vmem>>, %arg2: memref<1024x128xbf16, #tpu.memory_space<vmem>>, %arg3: memref<128x128xbf16, #tpu.memory_space<vmem>>, %arg4: memref<8x128xf32, #tpu.memory_space<vmem>>) attributes {dimension_semantics = [#tpu.dimension_semantics<parallel>], iteration_bounds = array<i64: 1>, scalar_prefetch = 0 : i64, scratch_operands = 0 : i64, tpu.core_type = #tpu.core_type<tc>, window_params = [{transform_indices = @transform_0, window_bounds = array<i64: 8, 1024>}, {pipeline_mode = #tpu.pipeline_mode<synchronous>, transform_indices = @transform_1, window_bounds = array<i64: 1024, 128>}, {pipeline_mode = #tpu.pipeline_mode<synchronous>, transform_indices = @transform_2, window_bounds = array<i64: 128, 128>}, {transform_indices = @transform_3, window_bounds = array<i64: 8, 128>}]} {
    %c0 = arith.constant 0 : index
    %c0_0 = arith.constant 0 : index
    %0 = vector.load %arg1[%c0, %c0_0] : memref<8x1024xf32, #tpu.memory_space<vmem>>, vector<8x1024xf32>
    %1 = arith.truncf %0 : vector<8x1024xf32> to vector<8x1024xbf16>
    %c0_1 = arith.constant 0 : index
    %c0_2 = arith.constant 0 : index
    %2 = vector.load %arg2[%c0_1, %c0_2] : memref<1024x128xbf16, #tpu.memory_space<vmem>>, vector<1024x128xbf16>
    %cst = arith.constant dense<0.000000e+00> : vector<8x128xf32>
    %3 = tpu.matmul %1, %2, %cst {dimension_numbers = #tpu.dot_dimension_numbers<[1], [0], [0], [1], [0, 0, 1, 1], [], []>} : vector<8x1024xbf16>, vector<1024x128xbf16>, vector<8x128xf32> -> vector<8x128xf32>
    %4 = arith.mulf %3, %3 : vector<8x128xf32>
    %5 = arith.truncf %4 : vector<8x128xf32> to vector<8x128xbf16>
    %c0_3 = arith.constant 0 : index
    %c0_4 = arith.constant 0 : index
    %6 = vector.load %arg3[%c0_3, %c0_4] : memref<128x128xbf16, #tpu.memory_space<vmem>>, vector<128x128xbf16>
    %cst_5 = arith.constant dense<0.000000e+00> : vector<8x128xf32>
    %7 = tpu.matmul %5, %6, %cst_5 {dimension_numbers = #tpu.dot_dimension_numbers<[1], [0], [0], [1], [0, 0, 1, 1], [], []>} : vector<8x128xbf16>, vector<128x128xbf16>, vector<8x128xf32> -> vector<8x128xf32>
    %cst_6 = arith.constant 8.63167442E-5 : f32
    %8 = vector.broadcast %cst_6 : f32 to vector<8x128xf32>
    %9 = arith.mulf %7, %8 : vector<8x128xf32>
    %c0_7 = arith.constant 0 : index
    %c0_8 = arith.constant 0 : index
    %10 = vector.load %arg4[%c0_7, %c0_8] : memref<8x128xf32, #tpu.memory_space<vmem>>, vector<8x128xf32>
    tpu.vector_store %arg4[%c0_7, %c0_8], %9 {strides = array<i32>} : memref<8x128xf32, #tpu.memory_space<vmem>>, vector<8x128xf32>,
    return
  }
  func.func @transform_0(%arg0: i32) -> (i32, i32) {
    %c0_i32 = arith.constant 0 : i32
    %c0_i32_0 = arith.constant 0 : i32
    return %arg0, %c0_i32 : i32, i32
  }
  func.func @transform_1(%arg0: i32) -> (i32, i32) {
    %c0_i32 = arith.constant 0 : i32
    %c0_i32_0 = arith.constant 0 : i32
    %c0_i32_1 = arith.constant 0 : i32
    return %c0_i32, %c0_i32_0 : i32, i32
  }
  func.func @transform_2(%arg0: i32) -> (i32, i32) {
    %c0_i32 = arith.constant 0 : i32
    %c0_i32_0 = arith.constant 0 : i32
    %c0_i32_1 = arith.constant 0 : i32
    return %c0_i32, %c0_i32_0 : i32, i32
  }
  func.func @transform_3(%arg0: i32) -> (i32, i32) {
    %c0_i32 = arith.constant 0 : i32
    %c0_i32_0 = arith.constant 0 : i32
    return %arg0, %c0_i32 : i32, i32
  }
}

</mosaic_0001>

<llo_original>
// kernel: tpu_custom_call.1
$region0: #{tpu_custom_call.1}
  #allocation0 [shape = 'u32[]', space=smem, size = 0x4, offset = 0x4, fixed_abs, tag = 'smem constant byte address 0x4 - core index']
  #allocation1 [shape = 'u32[144,128]{1,0:T(1,128)}', space=vmem, size = 0x12000, scoped, tag = 'internal scratch']
  %s0 = inlined_call_operand.hbm [shape: f32[8,1024], index: 0, kind: input, shape index: {}]
  %s1 = inlined_call_operand.hbm [shape: bf16[1024,128], index: 1, kind: input, shape index: {}]
  %s2 = inlined_call_operand.hbm [shape: bf16[128,128], index: 2, kind: input, shape index: {}]
  %s3 = inlined_call_operand.hbm [shape: f32[8,128], index: 3, kind: output, shape index: {}]
  %s4 = sld [smem:[#allocation0]]
  $region34: #{tpu_custom_call.1} parent=0
    _
  %s6 = ssub.s32 1, %s4
  %s7 = scalar_select 0, %s6, %s4
  $region1: #{tpu_custom_call.1} parent=0
    #allocation2 [shape = 'u8[32768]{0}', space=vmem, size = 0x8000, scoped, tag = 'input window, operand 0, single buffered']
    #allocation3 [shape = 's32[1]{0}', space=sflag, size = 0x4, scoped, tag = 'scoped memory for tpu_custom_call.1']
    #allocation4 [shape = 's32[1]{0}', space=sflag, size = 0x4, scoped, tag = 'scoped memory for tpu_custom_call.1']
    #allocation5 [shape = 'u8[262144]{0}', space=vmem, size = 0x40000, scoped, tag = 'input window, operand 1, single buffered']
    #allocation6 [shape = 's32[1]{0}', space=sflag, size = 0x4, scoped, tag = 'scoped memory for tpu_custom_call.1']
    #allocation7 [shape = 'u8[32768]{0}', space=vmem, size = 0x8000, scoped, tag = 'input window, operand 2, single buffered']
    #allocation8 [shape = 'u8[4096]{0}', space=vmem, size = 0x1000, scoped, tag = 'output window, operand 0, single buffered']
    %8 = vsyncpa [#allocation3], 0
    %9 = vsyncpa [#allocation6], 0
    %10 = vsyncpa [#allocation4], 0
    // Predicated region
    $region2: #{tpu_custom_call.1} parent=1 // pred_check
      _
    $region3: #{tpu_custom_call.1} parent=1 // pred_check_branch
      %12 = sbr.rel (0) target = $region5
    $region4: #{tpu_custom_call.1} parent=1 // pred_region
      %s14 = ssub.s32 1024, 1024
      %15 = vsyncadd [#allocation3], %s14
      %s17 = sshll.u32 [#allocation2], 4
      %s18 = int_to_ptr.vmem [resolvable:$true] %s17
      %20 = dma.hbm_to_vmem [thread:$0]  %s0, 1024, %s18, [#allocation3]
    $region5: #{tpu_custom_call.1} parent=1 // pred_fallthru
      _
    // Predicated region
    $region6: #{tpu_custom_call.1} parent=1 // pred_check
      _
    $region7: #{tpu_custom_call.1} parent=1 // pred_check_branch
      %22 = sbr.rel (0) target = $region9
    $region8: #{tpu_custom_call.1} parent=1 // pred_region
      %s24 = ssub.s32 8192, 8192
      %25 = vsyncadd [#allocation6], %s24
      %s26 = sshll.u32 [#allocation5], 4
      %s27 = int_to_ptr.vmem [resolvable:$true] %s26
      %32 = dma.hbm_to_vmem [thread:$0]  %s1, 8192, %s27, [#allocation6], 64, 64, 4
    $region9: #{tpu_custom_call.1} parent=1 // pred_fallthru
      _
    // Predicated region
    $region10: #{tpu_custom_call.1} parent=1 // pred_check
      _
    $region11: #{tpu_custom_call.1} parent=1 // pred_check_branch
      %34 = sbr.rel (0) target = $region13
    $region12: #{tpu_custom_call.1} parent=1 // pred_region
      %s36 = ssub.s32 1024, 1024
      %37 = vsyncadd [#allocation6], %s36
      %s38 = sshll.u32 [#allocation7], 4
      %s39 = int_to_ptr.vmem [resolvable:$true] %s38
      %44 = dma.hbm_to_vmem [thread:$0]  %s2, 1024, %s39, [#allocation6], 64, 64, 4
    $region13: #{tpu_custom_call.1} parent=1 // pred_fallthru
      _
    // Predicated region
    $region14: #{tpu_custom_call.1} parent=1 // pred_check
      _
    $region15: #{tpu_custom_call.1} parent=1 // pred_check_branch
      %46 = sbr.rel (0) target = $region17
    $region16: #{tpu_custom_call.1} parent=1 // pred_region
      %47 = dma.done [#allocation3], 1024
    $region17: #{tpu_custom_call.1} parent=1 // pred_fallthru
      _
    // Predicated region
    $region18: #{tpu_custom_call.1} parent=1 // pred_check
      _
    $region19: #{tpu_custom_call.1} parent=1 // pred_check_branch
      %49 = sbr.rel (0) target = $region21
    $region20: #{tpu_custom_call.1} parent=1 // pred_region
      %50 = dma.done [#allocation6], 8192
    $region21: #{tpu_custom_call.1} parent=1 // pred_fallthru
      _
    // Predicated region
    $region22: #{tpu_custom_call.1} parent=1 // pred_check
      _
    $region23: #{tpu_custom_call.1} parent=1 // pred_check_branch
      %52 = sbr.rel (0) target = $region25
    $region24: #{tpu_custom_call.1} parent=1 // pred_region
      %53 = dma.done [#allocation6], 1024
    $region25: #{tpu_custom_call.1} parent=1 // pred_fallthru
      _
    %v55 = vld [vmem:[#allocation2] sm:$0xff]
    %v56 = vld [vmem:[#allocation2 + $0x8] sm:$0xff]
    %v57 = vld [vmem:[#allocation2 + $0x10] sm:$0xff]
    %v58 = vld [vmem:[#allocation2 + $0x18] sm:$0xff]
    %v59 = vld [vmem:[#allocation2 + $0x20] sm:$0xff]
    %v60 = vld [vmem:[#allocation2 + $0x28] sm:$0xff]
    %v61 = vld [vmem:[#allocation2 + $0x30] sm:$0xff]
    %v62 = vld [vmem:[#allocation2 + $0x38] sm:$0xff]
    %v63 = vpack.c.bf16 %v55, %v55
    %v64 = vpack.c.bf16 %v56, %v56
    %v65 = vpack.c.bf16 %v57, %v57
    %v66 = vpack.c.bf16 %v58, %v58
    %v67 = vpack.c.bf16 %v59, %v59
    %v68 = vpack.c.bf16 %v60, %v60
    %v69 = vpack.c.bf16 %v61, %v61
    %v70 = vpack.c.bf16 %v62, %v62
    %v71 = vld [vmem:[#allocation5] sm:$0xf]
    %v72 = vld [vmem:[#allocation5 + $0x4] sm:$0xf]
    %v73 = vld [vmem:[#allocation5 + $0x8] sm:$0xf]
    %v74 = vld [vmem:[#allocation5 + $0xc] sm:$0xf]
    %v75 = vld [vmem:[#allocation5 + $0x10] sm:$0xf]
    %v76 = vld [vmem:[#allocation5 + $0x14] sm:$0xf]
    %v77 = vld [vmem:[#allocation5 + $0x18] sm:$0xf]
    %v78 = vld [vmem:[#allocation5 + $0x1c] sm:$0xf]
    %v79 = vld [vmem:[#allocation5 + $0x20] sm:$0xf]
    %v80 = vld [vmem:[#allocation5 + $0x24] sm:$0xf]
    %v81 = vld [vmem:[#allocation5 + $0x28] sm:$0xf]
    %v82 = vld [vmem:[#allocation5 + $0x2c] sm:$0xf]
    %v83 = vld [vmem:[#allocation5 + $0x30] sm:$0xf]
    %v84 = vld [vmem:[#allocation5 + $0x34] sm:$0xf]
    %v85 = vld [vmem:[#allocation5 + $0x38] sm:$0xf]
    %v86 = vld [vmem:[#allocation5 + $0x3c] sm:$0xf]
    %v87 = vld [vmem:[#allocation5 + $0x40] sm:$0xf]
    %v88 = vld [vmem:[#allocation5 + $0x44] sm:$0xf]
    %v89 = vld [vmem:[#allocation5 + $0x48] sm:$0xf]
    %v90 = vld [vmem:[#allocation5 + $0x4c] sm:$0xf]
    %v91 = vld [vmem:[#allocation5 + $0x50] sm:$0xf]
    %v92 = vld [vmem:[#allocation5 + $0x54] sm:$0xf]
    %v93 = vld [vmem:[#allocation5 + $0x58] sm:$0xf]
    %v94 = vld [vmem:[#allocation5 + $0x5c] sm:$0xf]
    %v95 = vld [vmem:[#allocation5 + $0x60] sm:$0xf]
    %v96 = vld [vmem:[#allocation5 + $0x64] sm:$0xf]
    %v97 = vld [vmem:[#allocation5 + $0x68] sm:$0xf]
    %v98 = vld [vmem:[#allocation5 + $0x6c] sm:$0xf]
    %v99 = vld [vmem:[#allocation5 + $0x70] sm:$0xf]
    %v100 = vld [vmem:[#allocation5 + $0x74] sm:$0xf]
    %v101 = vld [vmem:[#allocation5 + $0x78] sm:$0xf]
    %v102 = vld [vmem:[#allocation5 + $0x7c] sm:$0xf]
    %v103 = vld [vmem:[#allocation5 + $0x80] sm:$0xf]
    %v104 = vld [vmem:[#allocation5 + $0x84] sm:$0xf]
    %v105 = vld [vmem:[#allocation5 + $0x88] sm:$0xf]
    %v106 = vld [vmem:[#allocation5 + $0x8c] sm:$0xf]
    %v107 = vld [vmem:[#allocation5 + $0x90] sm:$0xf]
    %v108 = vld [vmem:[#allocation5 + $0x94] sm:$0xf]
    %v109 = vld [vmem:[#allocation5 + $0x98] sm:$0xf]
    %v110 = vld [vmem:[#allocation5 + $0x9c] sm:$0xf]
    %v111 = vld [vmem:[#allocation5 + $0xa0] sm:$0xf]
    %v112 = vld [vmem:[#allocation5 + $0xa4] sm:$0xf]
    %v113 = vld [vmem:[#allocation5 + $0xa8] sm:$0xf]
    %v114 = vld [vmem:[#allocation5 + $0xac] sm:$0xf]
    %v115 = vld [vmem:[#allocation5 + $0xb0] sm:$0xf]
    %v116 = vld [vmem:[#allocation5 + $0xb4] sm:$0xf]
    %v117 = vld [vmem:[#allocation5 + $0xb8] sm:$0xf]
    %v118 = vld [vmem:[#allocation5 + $0xbc] sm:$0xf]
    %v119 = vld [vmem:[#allocation5 + $0xc0] sm:$0xf]
    %v120 = vld [vmem:[#allocation5 + $0xc4] sm:$0xf]
    %v121 = vld [vmem:[#allocation5 + $0xc8] sm:$0xf]
    %v122 = vld [vmem:[#allocation5 + $0xcc] sm:$0xf]
    %v123 = vld [vmem:[#allocation5 + $0xd0] sm:$0xf]
    %v124 = vld [vmem:[#allocation5 + $0xd4] sm:$0xf]
    %v125 = vld [vmem:[#allocation5 + $0xd8] sm:$0xf]
    %v126 = vld [vmem:[#allocation5 + $0xdc] sm:$0xf]
    %v127 = vld [vmem:[#allocation5 + $0xe0] sm:$0xf]
    %v128 = vld [vmem:[#allocation5 + $0xe4] sm:$0xf]
    %v129 = vld [vmem:[#allocation5 + $0xe8] sm:$0xf]
    %v130 = vld [vmem:[#allocation5 + $0xec] sm:$0xf]
    %v131 = vld [vmem:[#allocation5 + $0xf0] sm:$0xf]
    %v132 = vld [vmem:[#allocation5 + $0xf4] sm:$0xf]
    %v133 = vld [vmem:[#allocation5 + $0xf8] sm:$0xf]
    %v134 = vld [vmem:[#allocation5 + $0xfc] sm:$0xf]
    %v135 = vld [vmem:[#allocation5 + $0x100] sm:$0xf]
    %v136 = vld [vmem:[#allocation5 + $0x104] sm:$0xf]
    %v137 = vld [vmem:[#allocation5 + $0x108] sm:$0xf]
    %v138 = vld [vmem:[#allocation5 + $0x10c] sm:$0xf]
    %v139 = vld [vmem:[#allocation5 + $0x110] sm:$0xf]
    %v140 = vld [vmem:[#allocation5 + $0x114] sm:$0xf]
    %v141 = vld [vmem:[#allocation5 + $0x118] sm:$0xf]
    %v142 = vld [vmem:[#allocation5 + $0x11c] sm:$0xf]
    %v143 = vld [vmem:[#allocation5 + $0x120] sm:$0xf]
    %v144 = vld [vmem:[#allocation5 + $0x124] sm:$0xf]
    %v145 = vld [vmem:[#allocation5 + $0x128] sm:$0xf]
    %v146 = vld [vmem:[#allocation5 + $0x12c] sm:$0xf]
    %v147 = vld [vmem:[#allocation5 + $0x130] sm:$0xf]
    %v148 = vld [vmem:[#allocation5 + $0x134] sm:$0xf]
    %v149 = vld [vmem:[#allocation5 + $0x138] sm:$0xf]
    %v150 = vld [vmem:[#allocation5 + $0x13c] sm:$0xf]
    %v151 = vld [vmem:[#allocation5 + $0x140] sm:$0xf]
    %v152 = vld [vmem:[#allocation5 + $0x144] sm:$0xf]
    %v153 = vld [vmem:[#allocation5 + $0x148] sm:$0xf]
    %v154 = vld [vmem:[#allocation5 + $0x14c] sm:$0xf]
    %v155 = vld [vmem:[#allocation5 + $0x150] sm:$0xf]
    %v156 = vld [vmem:[#allocation5 + $0x154] sm:$0xf]
    %v157 = vld [vmem:[#allocation5 + $0x158] sm:$0xf]
    %v158 = vld [vmem:[#allocation5 + $0x15c] sm:$0xf]
    %v159 = vld [vmem:[#allocation5 + $0x160] sm:$0xf]
    %v160 = vld [vmem:[#allocation5 + $0x164] sm:$0xf]
    %v161 = vld [vmem:[#allocation5 + $0x168] sm:$0xf]
    %v162 = vld [vmem:[#allocation5 + $0x16c] sm:$0xf]
    %v163 = vld [vmem:[#allocation5 + $0x170] sm:$0xf]
    %v164 = vld [vmem:[#allocation5 + $0x174] sm:$0xf]
    %v165 = vld [vmem:[#allocation5 + $0x178] sm:$0xf]
    %v166 = vld [vmem:[#allocation5 + $0x17c] sm:$0xf]
    %v167 = vld [vmem:[#allocation5 + $0x180] sm:$0xf]
    %v168 = vld [vmem:[#allocation5 + $0x184] sm:$0xf]
    %v169 = vld [vmem:[#allocation5 + $0x188] sm:$0xf]
    %v170 = vld [vmem:[#allocation5 + $0x18c] sm:$0xf]
    %v171 = vld [vmem:[#allocation5 + $0x190] sm:$0xf]
    %v172 = vld [vmem:[#allocation5 + $0x194] sm:$0xf]
    %v173 = vld [vmem:[#allocation5 + $0x198] sm:$0xf]
    %v174 = vld [vmem:[#allocation5 + $0x19c] sm:$0xf]
    %v175 = vld [vmem:[#allocation5 + $0x1a0] sm:$0xf]
    %v176 = vld [vmem:[#allocation5 + $0x1a4] sm:$0xf]
    %v177 = vld [vmem:[#allocation5 + $0x1a8] sm:$0xf]
    %v178 = vld [vmem:[#allocation5 + $0x1ac] sm:$0xf]
    %v179 = vld [vmem:[#allocation5 + $0x1b0] sm:$0xf]
    %v180 = vld [vmem:[#allocation5 + $0x1b4] sm:$0xf]
    %v181 = vld [vmem:[#allocation5 + $0x1b8] sm:$0xf]
    %v182 = vld [vmem:[#allocation5 + $0x1bc] sm:$0xf]
    %v183 = vld [vmem:[#allocation5 + $0x1c0] sm:$0xf]
    %v184 = vld [vmem:[#allocation5 + $0x1c4] sm:$0xf]
    %v185 = vld [vmem:[#allocation5 + $0x1c8] sm:$0xf]
    %v186 = vld [vmem:[#allocation5 + $0x1cc] sm:$0xf]
    %v187 = vld [vmem:[#allocation5 + $0x1d0] sm:$0xf]
    %v188 = vld [vmem:[#allocation5 + $0x1d4] sm:$0xf]
    %v189 = vld [vmem:[#allocation5 + $0x1d8] sm:$0xf]
    %v190 = vld [vmem:[#allocation5 + $0x1dc] sm:$0xf]
    %v191 = vld [vmem:[#allocation5 + $0x1e0] sm:$0xf]
    %v192 = vld [vmem:[#allocation5 + $0x1e4] sm:$0xf]
    %v193 = vld [vmem:[#allocation5 + $0x1e8] sm:$0xf]
    %v194 = vld [vmem:[#allocation5 + $0x1ec] sm:$0xf]
    %v195 = vld [vmem:[#allocation5 + $0x1f0] sm:$0xf]
    %v196 = vld [vmem:[#allocation5 + $0x1f4] sm:$0xf]
    %v197 = vld [vmem:[#allocation5 + $0x1f8] sm:$0xf]
    %v198 = vld [vmem:[#allocation5 + $0x1fc] sm:$0xf]
    %v327 = vunpack.c.l.b16 %v71
    %v328 = vunpack.c.l.b16 %v72
    %v329 = vunpack.c.l.b16 %v73
    %v330 = vunpack.c.l.b16 %v74
    %v331 = vunpack.c.l.b16 %v75
    %v332 = vunpack.c.l.b16 %v76
    %v333 = vunpack.c.l.b16 %v77
    %v334 = vunpack.c.l.b16 %v78
    %v335 = vunpack.c.l.b16 %v79
    %v336 = vunpack.c.l.b16 %v80
    %v337 = vunpack.c.l.b16 %v81
    %v338 = vunpack.c.l.b16 %v82
    %v339 = vunpack.c.l.b16 %v83
    %v340 = vunpack.c.l.b16 %v84
    %v341 = vunpack.c.l.b16 %v85
    %v342 = vunpack.c.l.b16 %v86
    %v343 = vunpack.c.l.b16 %v87
    %v344 = vunpack.c.l.b16 %v88
    %v345 = vunpack.c.l.b16 %v89
    %v346 = vunpack.c.l.b16 %v90
    %v347 = vunpack.c.l.b16 %v91
    %v348 = vunpack.c.l.b16 %v92
    %v349 = vunpack.c.l.b16 %v93
    %v350 = vunpack.c.l.b16 %v94
    %v351 = vunpack.c.l.b16 %v95
    %v352 = vunpack.c.l.b16 %v96
    %v353 = vunpack.c.l.b16 %v97
    %v354 = vunpack.c.l.b16 %v98
    %v355 = vunpack.c.l.b16 %v99
    %v356 = vunpack.c.l.b16 %v100
    %v357 = vunpack.c.l.b16 %v101
    %v358 = vunpack.c.l.b16 %v102
    %v359 = vunpack.c.l.b16 %v103
    %v360 = vunpack.c.l.b16 %v104
    %v361 = vunpack.c.l.b16 %v105
    %v362 = vunpack.c.l.b16 %v106
    %v363 = vunpack.c.l.b16 %v107
    %v364 = vunpack.c.l.b16 %v108
    %v365 = vunpack.c.l.b16 %v109
    %v366 = vunpack.c.l.b16 %v110
    %v367 = vunpack.c.l.b16 %v111
    %v368 = vunpack.c.l.b16 %v112
    %v369 = vunpack.c.l.b16 %v113
    %v370 = vunpack.c.l.b16 %v114
    %v371 = vunpack.c.l.b16 %v115
    %v372 = vunpack.c.l.b16 %v116
    %v373 = vunpack.c.l.b16 %v117
    %v374 = vunpack.c.l.b16 %v118
    %v375 = vunpack.c.l.b16 %v119
    %v376 = vunpack.c.l.b16 %v120
    %v377 = vunpack.c.l.b16 %v121
    %v378 = vunpack.c.l.b16 %v122
    %v379 = vunpack.c.l.b16 %v123
    %v380 = vunpack.c.l.b16 %v124
    %v381 = vunpack.c.l.b16 %v125
    %v382 = vunpack.c.l.b16 %v126
    %v383 = vunpack.c.l.b16 %v127
    %v384 = vunpack.c.l.b16 %v128
    %v385 = vunpack.c.l.b16 %v129
    %v386 = vunpack.c.l.b16 %v130
    %v387 = vunpack.c.l.b16 %v131
    %v388 = vunpack.c.l.b16 %v132
    %v389 = vunpack.c.l.b16 %v133
    %v390 = vunpack.c.l.b16 %v134
    %v391 = vunpack.c.l.b16 %v135
    %v392 = vunpack.c.l.b16 %v136
    %v393 = vunpack.c.l.b16 %v137
    %v394 = vunpack.c.l.b16 %v138
    %v395 = vunpack.c.l.b16 %v139
    %v396 = vunpack.c.l.b16 %v140
    %v397 = vunpack.c.l.b16 %v141
    %v398 = vunpack.c.l.b16 %v142
    %v399 = vunpack.c.l.b16 %v143
    %v400 = vunpack.c.l.b16 %v144
    %v401 = vunpack.c.l.b16 %v145
    %v402 = vunpack.c.l.b16 %v146
    %v403 = vunpack.c.l.b16 %v147
    %v404 = vunpack.c.l.b16 %v148
    %v405 = vunpack.c.l.b16 %v149
    %v406 = vunpack.c.l.b16 %v150
    %v407 = vunpack.c.l.b16 %v151
    %v408 = vunpack.c.l.b16 %v152
    %v409 = vunpack.c.l.b16 %v153
    %v410 = vunpack.c.l.b16 %v154
    %v411 = vunpack.c.l.b16 %v155
    %v412 = vunpack.c.l.b16 %v156
    %v413 = vunpack.c.l.b16 %v157
    %v414 = vunpack.c.l.b16 %v158
    %v415 = vunpack.c.l.b16 %v159
    %v416 = vunpack.c.l.b16 %v160
    %v417 = vunpack.c.l.b16 %v161
    %v418 = vunpack.c.l.b16 %v162
    %v419 = vunpack.c.l.b16 %v163
    %v420 = vunpack.c.l.b16 %v164
    %v421 = vunpack.c.l.b16 %v165
    %v422 = vunpack.c.l.b16 %v166
    %v423 = vunpack.c.l.b16 %v167
    %v424 = vunpack.c.l.b16 %v168
    %v425 = vunpack.c.l.b16 %v169
    %v426 = vunpack.c.l.b16 %v170
    %v427 = vunpack.c.l.b16 %v171
    %v428 = vunpack.c.l.b16 %v172
    %v429 = vunpack.c.l.b16 %v173
    %v430 = vunpack.c.l.b16 %v174
    %v431 = vunpack.c.l.b16 %v175
    %v432 = vunpack.c.l.b16 %v176
    %v433 = vunpack.c.l.b16 %v177
    %v434 = vunpack.c.l.b16 %v178
    %v435 = vunpack.c.l.b16 %v179
    %v436 = vunpack.c.l.b16 %v180
    %v437 = vunpack.c.l.b16 %v181
    %v438 = vunpack.c.l.b16 %v182
    %v439 = vunpack.c.l.b16 %v183
    %v440 = vunpack.c.l.b16 %v184
    %v441 = vunpack.c.l.b16 %v185
    %v442 = vunpack.c.l.b16 %v186
    %v443 = vunpack.c.l.b16 %v187
    %v444 = vunpack.c.l.b16 %v188
    %v445 = vunpack.c.l.b16 %v189
    %v446 = vunpack.c.l.b16 %v190
    %v447 = vunpack.c.l.b16 %v191
    %v448 = vunpack.c.l.b16 %v192
    %v449 = vunpack.c.l.b16 %v193
    %v450 = vunpack.c.l.b16 %v194
    %v451 = vunpack.c.l.b16 %v195
    %v452 = vunpack.c.l.b16 %v196
    %v453 = vunpack.c.l.b16 %v197
    %v454 = vunpack.c.l.b16 %v198
    %v455 = vpack.c.b16 %v328, %v327
    %v456 = vpack.c.b16 %v330, %v329
    %v457 = vpack.c.b16 %v332, %v331
    %v458 = vpack.c.b16 %v334, %v333
    %v459 = vpack.c.b16 %v336, %v335
    %v460 = vpack.c.b16 %v338, %v337
    %v461 = vpack.c.b16 %v340, %v339
    %v462 = vpack.c.b16 %v342, %v341
    %v463 = vpack.c.b16 %v344, %v343
    %v464 = vpack.c.b16 %v346, %v345
    %v465 = vpack.c.b16 %v348, %v347
    %v466 = vpack.c.b16 %v350, %v349
    %v467 = vpack.c.b16 %v352, %v351
    %v468 = vpack.c.b16 %v354, %v353
    %v469 = vpack.c.b16 %v356, %v355
    %v470 = vpack.c.b16 %v358, %v357
    %v471 = vpack.c.b16 %v360, %v359
    %v472 = vpack.c.b16 %v362, %v361
    %v473 = vpack.c.b16 %v364, %v363
    %v474 = vpack.c.b16 %v366, %v365
    %v475 = vpack.c.b16 %v368, %v367
    %v476 = vpack.c.b16 %v370, %v369
    %v477 = vpack.c.b16 %v372, %v371
    %v478 = vpack.c.b16 %v374, %v373
    %v479 = vpack.c.b16 %v376, %v375
    %v480 = vpack.c.b16 %v378, %v377
    %v481 = vpack.c.b16 %v380, %v379
    %v482 = vpack.c.b16 %v382, %v381
    %v483 = vpack.c.b16 %v384, %v383
    %v484 = vpack.c.b16 %v386, %v385
    %v485 = vpack.c.b16 %v388, %v387
    %v486 = vpack.c.b16 %v390, %v389
    %v487 = vpack.c.b16 %v392, %v391
    %v488 = vpack.c.b16 %v394, %v393
    %v489 = vpack.c.b16 %v396, %v395
    %v490 = vpack.c.b16 %v398, %v397
    %v491 = vpack.c.b16 %v400, %v399
    %v492 = vpack.c.b16 %v402, %v401
    %v493 = vpack.c.b16 %v404, %v403
    %v494 = vpack.c.b16 %v406, %v405
    %v495 = vpack.c.b16 %v408, %v407
    %v496 = vpack.c.b16 %v410, %v409
    %v497 = vpack.c.b16 %v412, %v411
    %v498 = vpack.c.b16 %v414, %v413
    %v499 = vpack.c.b16 %v416, %v415
    %v500 = vpack.c.b16 %v418, %v417
    %v501 = vpack.c.b16 %v420, %v419
    %v502 = vpack.c.b16 %v422, %v421
    %v503 = vpack.c.b16 %v424, %v423
    %v504 = vpack.c.b16 %v426, %v425
    %v505 = vpack.c.b16 %v428, %v427
    %v506 = vpack.c.b16 %v430, %v429
    %v507 = vpack.c.b16 %v432, %v431
    %v508 = vpack.c.b16 %v434, %v433
    %v509 = vpack.c.b16 %v436, %v435
    %v510 = vpack.c.b16 %v438, %v437
    %v511 = vpack.c.b16 %v440, %v439
    %v512 = vpack.c.b16 %v442, %v441
    %v513 = vpack.c.b16 %v444, %v443
    %v514 = vpack.c.b16 %v446, %v445
    %v515 = vpack.c.b16 %v448, %v447
    %v516 = vpack.c.b16 %v450, %v449
    %v517 = vpack.c.b16 %v452, %v451
    %v518 = vpack.c.b16 %v454, %v453
    %583 = vmatprep.subr.bf16.mxu0 0
    %584 = vmatpush1.bf16.msra.mxu0 %v462
    %585 = vmatprep.subr.bf16.mxu0 0
    %586 = vmatpush1.bf16.msra.mxu0 %v461
    %587 = vmatprep.subr.bf16.mxu0 0
    %588 = vmatpush1.bf16.msra.mxu0 %v460
    %589 = vmatprep.subr.bf16.mxu0 0
    %590 = vmatpush1.bf16.msra.mxu0 %v459
    %591 = vmatprep.subr.bf16.mxu0 0
    %592 = vmatpush1.bf16.msra.mxu0 %v458
    %593 = vmatprep.subr.bf16.mxu0 0
    %594 = vmatpush1.bf16.msra.mxu0 %v457
    %595 = vmatprep.subr.bf16.mxu0 0
    %596 = vmatpush1.bf16.msra.mxu0 %v456
    %597 = vmatprep.subr.bf16.mxu0 0
    %598 = vmatpush1.bf16.msra.mxu0 %v455
    %599 = vmatprep.subr.bf16.mxu0 0
    %600 = vmatpush2.bf16.msra.mxu0 %v470
    %601 = vmatprep.subr.bf16.mxu0 0
    %602 = vmatpush2.bf16.msra.mxu0 %v469
    %603 = vmatprep.subr.bf16.mxu0 0
    %604 = vmatpush2.bf16.msra.mxu0 %v468
    %605 = vmatprep.subr.bf16.mxu0 0
    %606 = vmatpush2.bf16.msra.mxu0 %v467
    %607 = vmatprep.subr.bf16.mxu0 0
    %608 = vmatpush2.bf16.msra.mxu0 %v466
    %609 = vmatprep.subr.bf16.mxu0 0
    %610 = vmatpush2.bf16.msra.mxu0 %v465
    %611 = vmatprep.subr.bf16.mxu0 0
    %612 = vmatpush2.bf16.msra.mxu0 %v464
    %613 = vmatprep.subr.bf16.mxu0 0
    %614 = vmatpush2.bf16.msra.mxu0 %v463
    %615 = vmatprep.mubr.bf16.mxu0 %v64
    %616 = vmatmul.mubr.bf16.gmra.mxu0 %v63
    %v617 = vpop.f32.mrf.mxu0
    %v618 = vadd.f32 0.0, %v617
    %v619 = vpop.f32.mrf.mxu0
    %v620 = vpop.f32.mrf.mxu0
    %v621 = vpop.f32.mrf.mxu0
    %622 = vdwg.mxu0
    %623 = vmatprep.subr.bf16.mxu0 0
    %624 = vmatpush1.bf16.msra.mxu0 %v478
    %625 = vmatprep.subr.bf16.mxu0 0
    %626 = vmatpush1.bf16.msra.mxu0 %v477
    %627 = vmatprep.subr.bf16.mxu0 0
    %628 = vmatpush1.bf16.msra.mxu0 %v476
    %629 = vmatprep.subr.bf16.mxu0 0
    %630 = vmatpush1.bf16.msra.mxu0 %v475
    %631 = vmatprep.subr.bf16.mxu0 0
    %632 = vmatpush1.bf16.msra.mxu0 %v474
    %633 = vmatprep.subr.bf16.mxu0 0
    %634 = vmatpush1.bf16.msra.mxu0 %v473
    %635 = vmatprep.subr.bf16.mxu0 0
    %636 = vmatpush1.bf16.msra.mxu0 %v472
    %637 = vmatprep.subr.bf16.mxu0 0
    %638 = vmatpush1.bf16.msra.mxu0 %v471
    %639 = vmatprep.subr.bf16.mxu0 0
    %640 = vmatpush2.bf16.msra.mxu0 %v486
    %641 = vmatprep.subr.bf16.mxu0 0
    %642 = vmatpush2.bf16.msra.mxu0 %v485
    %643 = vmatprep.subr.bf16.mxu0 0
    %644 = vmatpush2.bf16.msra.mxu0 %v484
    %645 = vmatprep.subr.bf16.mxu0 0
    %646 = vmatpush2.bf16.msra.mxu0 %v483
    %647 = vmatprep.subr.bf16.mxu0 0
    %648 = vmatpush2.bf16.msra.mxu0 %v482
    %649 = vmatprep.subr.bf16.mxu0 0
    %650 = vmatpush2.bf16.msra.mxu0 %v481
    %651 = vmatprep.subr.bf16.mxu0 0
    %652 = vmatpush2.bf16.msra.mxu0 %v480
    %653 = vmatprep.subr.bf16.mxu0 0
    %654 = vmatpush2.bf16.msra.mxu0 %v479
    %655 = vmatprep.mubr.bf16.mxu0 %v66
    %656 = vmatmul.mubr.bf16.gmra.mxu0 %v65
    %v657 = vpop.f32.mrf.mxu0
    %v658 = vadd.f32 %v618, %v657
    %v659 = vpop.f32.mrf.mxu0
    %v660 = vpop.f32.mrf.mxu0
    %v661 = vpop.f32.mrf.mxu0
    %662 = vdwg.mxu0
    %663 = vmatprep.subr.bf16.mxu0 0
    %664 = vmatpush1.bf16.msra.mxu0 %v494
    %665 = vmatprep.subr.bf16.mxu0 0
    %666 = vmatpush1.bf16.msra.mxu0 %v493
    %667 = vmatprep.subr.bf16.mxu0 0
    %668 = vmatpush1.bf16.msra.mxu0 %v492
    %669 = vmatprep.subr.bf16.mxu0 0
    %670 = vmatpush1.bf16.msra.mxu0 %v491
    %671 = vmatprep.subr.bf16.mxu0 0
    %672 = vmatpush1.bf16.msra.mxu0 %v490
    %673 = vmatprep.subr.bf16.mxu0 0
    %674 = vmatpush1.bf16.msra.mxu0 %v489
    %675 = vmatprep.subr.bf16.mxu0 0
    %676 = vmatpush1.bf16.msra.mxu0 %v488
    %677 = vmatprep.subr.bf16.mxu0 0
    %678 = vmatpush1.bf16.msra.mxu0 %v487
    %679 = vmatprep.subr.bf16.mxu0 0
    %680 = vmatpush2.bf16.msra.mxu0 %v502
    %681 = vmatprep.subr.bf16.mxu0 0
    %682 = vmatpush2.bf16.msra.mxu0 %v501
    %683 = vmatprep.subr.bf16.mxu0 0
    %684 = vmatpush2.bf16.msra.mxu0 %v500
    %685 = vmatprep.subr.bf16.mxu0 0
    %686 = vmatpush2.bf16.msra.mxu0 %v499
    %687 = vmatprep.subr.bf16.mxu0 0
    %688 = vmatpush2.bf16.msra.mxu0 %v498
    %689 = vmatprep.subr.bf16.mxu0 0
    %690 = vmatpush2.bf16.msra.mxu0 %v497
    %691 = vmatprep.subr.bf16.mxu0 0
    %692 = vmatpush2.bf16.msra.mxu0 %v496
    %693 = vmatprep.subr.bf16.mxu0 0
    %694 = vmatpush2.bf16.msra.mxu0 %v495
    %695 = vmatprep.mubr.bf16.mxu0 %v68
    %696 = vmatmul.mubr.bf16.gmra.mxu0 %v67
    %v697 = vpop.f32.mrf.mxu0
    %v698 = vadd.f32 %v658, %v697
    %v699 = vpop.f32.mrf.mxu0
    %v700 = vpop.f32.mrf.mxu0
    %v701 = vpop.f32.mrf.mxu0
    %702 = vdwg.mxu0
    %703 = vmatprep.subr.bf16.mxu0 0
    %704 = vmatpush1.bf16.msra.mxu0 %v510
    %705 = vmatprep.subr.bf16.mxu0 0
    %706 = vmatpush1.bf16.msra.mxu0 %v509
    %707 = vmatprep.subr.bf16.mxu0 0
    %708 = vmatpush1.bf16.msra.mxu0 %v508
    %709 = vmatprep.subr.bf16.mxu0 0
    %710 = vmatpush1.bf16.msra.mxu0 %v507
    %711 = vmatprep.subr.bf16.mxu0 0
    %712 = vmatpush1.bf16.msra.mxu0 %v506
    %713 = vmatprep.subr.bf16.mxu0 0
    %714 = vmatpush1.bf16.msra.mxu0 %v505
    %715 = vmatprep.subr.bf16.mxu0 0
    %716 = vmatpush1.bf16.msra.mxu0 %v504
    %717 = vmatprep.subr.bf16.mxu0 0
    %718 = vmatpush1.bf16.msra.mxu0 %v503
    %719 = vmatprep.subr.bf16.mxu0 0
    %720 = vmatpush2.bf16.msra.mxu0 %v518
    %721 = vmatprep.subr.bf16.mxu0 0
    %722 = vmatpush2.bf16.msra.mxu0 %v517
    %723 = vmatprep.subr.bf16.mxu0 0
    %724 = vmatpush2.bf16.msra.mxu0 %v516
    %725 = vmatprep.subr.bf16.mxu0 0
    %726 = vmatpush2.bf16.msra.mxu0 %v515
    %727 = vmatprep.subr.bf16.mxu0 0
    %728 = vmatpush2.bf16.msra.mxu0 %v514
    %729 = vmatprep.subr.bf16.mxu0 0
    %730 = vmatpush2.bf16.msra.mxu0 %v513
    %731 = vmatprep.subr.bf16.mxu0 0
    %732 = vmatpush2.bf16.msra.mxu0 %v512
    %733 = vmatprep.subr.bf16.mxu0 0
    %734 = vmatpush2.bf16.msra.mxu0 %v511
    %735 = vmatprep.mubr.bf16.mxu0 %v70
    %736 = vmatmul.mubr.bf16.gmra.mxu0 %v69
    %v737 = vpop.f32.mrf.mxu0
    %v738 = vadd.f32 %v698, %v737
    %v739 = vpop.f32.mrf.mxu0
    %v740 = vpop.f32.mrf.mxu0
    %v741 = vpop.f32.mrf.mxu0
    %742 = vdwg.mxu0
    %v743 = vmul.f32 %v738, %v738
    %v744 = vpack.c.bf16 %v743, %v743
    %v745 = vld [vmem:[#allocation7] sm:$0xf]
    %v746 = vld [vmem:[#allocation7 + $0x4] sm:$0xf]
    %v747 = vld [vmem:[#allocation7 + $0x8] sm:$0xf]
    %v748 = vld [vmem:[#allocation7 + $0xc] sm:$0xf]
    %v749 = vld [vmem:[#allocation7 + $0x10] sm:$0xf]
    %v750 = vld [vmem:[#allocation7 + $0x14] sm:$0xf]
    %v751 = vld [vmem:[#allocation7 + $0x18] sm:$0xf]
    %v752 = vld [vmem:[#allocation7 + $0x1c] sm:$0xf]
    %v753 = vld [vmem:[#allocation7 + $0x20] sm:$0xf]
    %v754 = vld [vmem:[#allocation7 + $0x24] sm:$0xf]
    %v755 = vld [vmem:[#allocation7 + $0x28] sm:$0xf]
    %v756 = vld [vmem:[#allocation7 + $0x2c] sm:$0xf]
    %v757 = vld [vmem:[#allocation7 + $0x30] sm:$0xf]
    %v758 = vld [vmem:[#allocation7 + $0x34] sm:$0xf]
    %v759 = vld [vmem:[#allocation7 + $0x38] sm:$0xf]
    %v760 = vld [vmem:[#allocation7 + $0x3c] sm:$0xf]
    %v777 = vunpack.c.l.b16 %v745
    %v778 = vunpack.c.l.b16 %v746
    %v779 = vunpack.c.l.b16 %v747
    %v780 = vunpack.c.l.b16 %v748
    %v781 = vunpack.c.l.b16 %v749
    %v782 = vunpack.c.l.b16 %v750
    %v783 = vunpack.c.l.b16 %v751
    %v784 = vunpack.c.l.b16 %v752
    %v785 = vunpack.c.l.b16 %v753
    %v786 = vunpack.c.l.b16 %v754
    %v787 = vunpack.c.l.b16 %v755
    %v788 = vunpack.c.l.b16 %v756
    %v789 = vunpack.c.l.b16 %v757
    %v790 = vunpack.c.l.b16 %v758
    %v791 = vunpack.c.l.b16 %v759
    %v792 = vunpack.c.l.b16 %v760
    %v793 = vpack.c.b16 %v778, %v777
    %v794 = vpack.c.b16 %v780, %v779
    %v795 = vpack.c.b16 %v782, %v781
    %v796 = vpack.c.b16 %v784, %v783
    %v797 = vpack.c.b16 %v786, %v785
    %v798 = vpack.c.b16 %v788, %v787
    %v799 = vpack.c.b16 %v790, %v789
    %v800 = vpack.c.b16 %v792, %v791
    %809 = vmatprep.subr.bf16.mxu0 0
    %810 = vmatpush1.bf16.msra.mxu0 %v800
    %811 = vmatprep.subr.bf16.mxu0 0
    %812 = vmatpush1.bf16.msra.mxu0 %v799
    %813 = vmatprep.subr.bf16.mxu0 0
    %814 = vmatpush1.bf16.msra.mxu0 %v798
    %815 = vmatprep.subr.bf16.mxu0 0
    %816 = vmatpush1.bf16.msra.mxu0 %v797
    %817 = vmatprep.subr.bf16.mxu0 0
    %818 = vmatpush1.bf16.msra.mxu0 %v796
    %819 = vmatprep.subr.bf16.mxu0 0
    %820 = vmatpush1.bf16.msra.mxu0 %v795
    %821 = vmatprep.subr.bf16.mxu0 0
    %822 = vmatpush1.bf16.msra.mxu0 %v794
    %823 = vmatprep.subr.bf16.mxu0 0
    %824 = vmatpush1.bf16.msra.mxu0 %v793
    %825 = vmatprep.subr.bf16.mxu0 0
    %826 = vmatpush2.bf16.msra.mxu0 0
    %827 = vmatprep.subr.bf16.mxu0 0
    %828 = vmatpush2.bf16.msra.mxu0 0
    %829 = vmatprep.subr.bf16.mxu0 0
    %830 = vmatpush2.bf16.msra.mxu0 0
    %831 = vmatprep.subr.bf16.mxu0 0
    %832 = vmatpush2.bf16.msra.mxu0 0
    %833 = vmatprep.subr.bf16.mxu0 0
    %834 = vmatpush2.bf16.msra.mxu0 0
    %835 = vmatprep.subr.bf16.mxu0 0
    %836 = vmatpush2.bf16.msra.mxu0 0
    %837 = vmatprep.subr.bf16.mxu0 0
    %838 = vmatpush2.bf16.msra.mxu0 0
    %839 = vmatprep.subr.bf16.mxu0 0
    %840 = vmatpush2.bf16.msra.mxu0 0
    %841 = vmatprep.mubr.bf16.mxu0 0
    %842 = vmatmul.mubr.bf16.gmra.mxu0 %v744
    %v843 = vpop.f32.mrf.mxu0
    %v844 = vadd.f32 0.0, %v843
    %v845 = vpop.f32.mrf.mxu0
    %v846 = vpop.f32.mrf.mxu0
    %v847 = vpop.f32.mrf.mxu0
    %848 = vdwg.mxu0
    %v849 = vmul.f32 %v844, 8.6316744e-05
    %850 = vst [vmem:[#allocation8] sm:$0xff] %v849
    // Predicated region
    $region26: #{tpu_custom_call.1} parent=1 // pred_check
      _
    $region27: #{tpu_custom_call.1} parent=1 // pred_check_branch
      %852 = sbr.rel (0) target = $region29
    $region28: #{tpu_custom_call.1} parent=1 // pred_region
      %s854 = ssub.s32 128, 128
      %855 = vsyncadd [#allocation4], %s854
      %s857 = sshll.u32 [#allocation8], 4
      %s858 = int_to_ptr.vmem [resolvable:$true] %s857
      %860 = dma.vmem_to_hbm [thread:$0]  %s858, 128, %s3, [#allocation4]
    $region29: #{tpu_custom_call.1} parent=1 // pred_fallthru
      _
    // Predicated region
    $region30: #{tpu_custom_call.1} parent=1 // pred_check
      _
    $region31: #{tpu_custom_call.1} parent=1 // pred_check_branch
      %862 = sbr.rel (0) target = $region33
    $region32: #{tpu_custom_call.1} parent=1 // pred_region
      %863 = dma.done [#allocation4], 128
    $region33: #{tpu_custom_call.1} parent=1 // pred_fallthru
      _
    %864 = vsyncpa [#allocation3], 1
    %865 = vsyncpa [#allocation6], 1
    %866 = vsyncpa [#allocation4], 1

</llo_original>
